<compile_context>
chip_gen: v7x
topology: tpu7x:2x2x1
jax: 0.10.0
libtpu: 0.0.40
codegen_flags: <defaults>
</compile_context>

<pallas_src>
import jax
import jax.numpy as jnp
from jax import lax
from jax.experimental import pallas as pl
from jax.experimental.pallas import tpu as pltpu


def _round_up(v, m):
    return (v + m - 1) // m * m


def _physical_vmem_bytes():
    """Physical VMEM per TensorCore; conservative 64 MiB (v7x) fallback."""
    try:
        info = pltpu.get_tpu_info()
        cap = getattr(info, "vmem_capacity_bytes", None)
        if cap:
            return int(cap)
    except Exception:
        pass
    return 64 * 1024 * 1024


def shape_aware_embed_kernel(x_ref, wt_ref, b_ref, o_ref):
    # x_ref: (TB, T, D)   wt_ref: (D_in, D_out) = weight.T   b_ref: (1, D_out)
    tb, t, d = x_ref.shape
    n = tb * t

    x = x_ref[...]                       # keep the input dtype (no blanket f32 copy)
    x2 = x.reshape(n, d)                 # layout-preserving when T % 8 == 0

    # shape_feat: x[t] - x[t-1], with t == 0 forced to zero.
    # Sublane roll runs on the XLU (otherwise-idle slot); wrap-around rows (the
    # first time-step of every sequence in the block) are exactly the masked rows.
    prev = pltpu.roll(x2, shift=1, axis=0)
    diff = x2 - prev
    row = lax.broadcasted_iota(jnp.int32, (n, d), 0)
    feat = jnp.where(row % t == 0, jnp.zeros_like(diff), diff)

    # y = feat @ W^T. Weight arrives pre-transposed, so this is a plain
    # (row, col) contraction -> no per-step XLU transpose. MXU accumulates in f32.
    y = lax.dot_general(
        feat, wt_ref[...],
        dimension_numbers=(((1,), (0,)), ((), ())),
        preferred_element_type=jnp.float32,
    )

    # Residual + bias in f32, single cast on the way out.
    out = x2.astype(jnp.float32) + y + b_ref[...].astype(jnp.float32)
    o_ref[...] = out.reshape(tb, t, d).astype(o_ref.dtype)


def shape_aware_embedding(x, weight, bias, *, batch_tile=None, vmem_limit_bytes=None):
    """x: (B, T, D); weight: (D, D) as nn.Linear stores it (out, in); bias: (D,)."""
    B, T, D = x.shape
    assert weight.shape == (D, D), "shape_linear is a square Linear(hidden, hidden)"
    assert bias.shape == (D,)

    # One-time O(D^2) transpose in HBM so the kernel never re-transposes per step.
    w_t = jnp.transpose(weight)          # (D_in, D_out)
    bias2 = bias.reshape(1, D)

    x_item = jnp.dtype(x.dtype).itemsize
    w_item = jnp.dtype(weight.dtype).itemsize

    # ---- generation / layout aware VMEM budgeting -------------------------
    Tp = _round_up(T, 8)                 # sublane padding of the (T, D) tile
    Dp = _round_up(D, 128)               # lane padding
    Dp8 = _round_up(D, 8)

    phys_vmem = _physical_vmem_bytes()
    if vmem_limit_bytes is None:
        # ~75% of physical VMEM: ~96 MiB on v5e/v6e (128 MiB), ~48 MiB on v7x (64 MiB).
        vmem_limit_bytes = phys_vmem * 3 // 4

    # Resident weight + bias (double-buffered by the pipeline), lane/sublane padded.
    resident_bytes = 2 * Dp8 * Dp * w_item + 2 * 8 * Dp * w_item
    # Per batch row of a block: double-buffered x + out tiles plus ~3 f32-sized
    # temporaries (feat, matmul result, residual sum), all padded.
    per_row_bytes = 4 * Tp * Dp * x_item + 3 * Tp * Dp * 4

    budget = max(int(vmem_limit_bytes) - resident_bytes - (2 << 20), per_row_bytes)

    if batch_tile is None:
        batch_tile = max(1, min(B, budget // per_row_bytes))
        # Ensure >=2 (ideally 4) grid steps so "parallel" feeds both v7x TCs and the
        # DMA pipeline has work to overlap; negligible cost on 1-TC chips.
        min_steps = min(B, 4)
        if min_steps >= 2:
            batch_tile = min(batch_tile, max(1, B // min_steps))
    batch_tile = max(1, min(int(batch_tile), B))

    grid = (pl.cdiv(B, batch_tile),)

    cost = pl.CostEstimate(
        flops=2 * B * T * D * D,
        transcendentals=0,
        bytes_accessed=2 * B * T * D * x_item + (D * D + D) * w_item,
    )

    return pl.pallas_call(
        shape_aware_embed_kernel,
        out_shape=jax.ShapeDtypeStruct((B, T, D), x.dtype),
        grid_spec=pl.GridSpec(
            grid=grid,
            in_specs=[
                # x: tiled over batch; full (T, D) per block so the diff needs no halo.
                pl.BlockSpec((batch_tile, T, D), lambda i: (i, 0, 0)),
                # transposed weight / bias: resident across all grid steps.
                pl.BlockSpec((D, D), lambda i: (0, 0)),
                pl.BlockSpec((1, D), lambda i: (0, 0)),
            ],
            out_specs=pl.BlockSpec((batch_tile, T, D), lambda i: (i, 0, 0)),
        ),
        compiler_params=pltpu.CompilerParams(
            dimension_semantics=("parallel",),   # shard batch tiles across v7x's 2 TCs
            vmem_limit_bytes=int(vmem_limit_bytes),
        ),
        cost_estimate=cost,
    )(x, w_t, bias2)


if __name__ == "__main__":
    # Module config: hidden_dim = 32; demo input (B, T, D) = (2, 8, 32)
    hidden_dim = 32
    B, T, D = 2, 8, hidden_dim

    key = jax.random.PRNGKey(0)
    kx, kw, kb = jax.random.split(key, 3)

    x = jax.random.normal(kx, (B, T, D), dtype=jnp.float32)

    # Deterministic PyTorch-like init: uniform(-1/sqrt(fan_in), 1/sqrt(fan_in))
    bound = 1.0 / (hidden_dim ** 0.5)
    weight = jax.random.uniform(kw, (hidden_dim, hidden_dim), jnp.float32, -bound, bound)
    bias = jax.random.uniform(kb, (hidden_dim,), jnp.float32, -bound, bound)

    out = shape_aware_embedding(x, weight, bias)
    out = jax.block_until_ready(out)

    # Pure-JAX reference: torch.diff(x, dim=1, prepend=x[:, :1, :]) then residual Linear.
    prev = jnp.concatenate([x[:, :1, :], x[:, :-1, :]], axis=1)
    shape_feat = x - prev
    ref = x + shape_feat @ weight.T + bias

    assert out.shape == (B, T, D)
    assert jnp.allclose(out, ref, atol=1e-5, rtol=1e-5)

    print("KERNEL_OK")
</pallas_src>

<mosaic_0001>
module attributes {stable_mosaic.version = 11 : i64} {
  func.func @shape_aware_embed_kernel(%arg0: i32, %arg1: memref<1x8x32xf32, #tpu.memory_space<vmem>>, %arg2: memref<32x32xf32, #tpu.memory_space<vmem>>, %arg3: memref<1x32xf32, #tpu.memory_space<vmem>>, %arg4: memref<1x8x32xf32, #tpu.memory_space<vmem>>) attributes {dimension_semantics = [#tpu.dimension_semantics<parallel>], iteration_bounds = array<i64: 2>, scalar_prefetch = 0 : i64, scratch_operands = 0 : i64, tpu.core_type = #tpu.core_type<tc>, window_params = [{transform_indices = @transform_0, window_bounds = array<i64: 1, 8, 32>}, {pipeline_mode = #tpu.pipeline_mode<synchronous>, transform_indices = @transform_1, window_bounds = array<i64: 32, 32>}, {pipeline_mode = #tpu.pipeline_mode<synchronous>, transform_indices = @transform_2, window_bounds = array<i64: 1, 32>}, {transform_indices = @transform_3, window_bounds = array<i64: 1, 8, 32>}]} {
    %c0 = arith.constant 0 : index
    %c0_0 = arith.constant 0 : index
    %c0_1 = arith.constant 0 : index
    %0 = vector.load %arg1[%c0, %c0_0, %c0_1] : memref<1x8x32xf32, #tpu.memory_space<vmem>>, vector<1x8x32xf32>
    %1 = vector.shape_cast %0 : vector<1x8x32xf32> to vector<8x32xf32>
    %c1_i32 = arith.constant 1 : i32
    %2 = tpu.dynamic_rotate %1 by %c1_i32 dim 0 : vector<8x32xf32>, i32 -> vector<8x32xf32>
    %3 = arith.subf %1, %2 : vector<8x32xf32>
    %4 = tpu.iota {dimensions = array<i32: 0>} : vector<8x32xi32>
    %c8_i32 = arith.constant 8 : i32
    %c0_i32 = arith.constant 0 : i32
    %5 = arith.cmpi eq, %c8_i32, %c0_i32 : i32
    %c1_i32_2 = arith.constant 1 : i32
    %6 = arith.select %5, %c1_i32_2, %c8_i32 : i32
    %7 = vector.broadcast %6 : i32 to vector<8x32xi32>
    %8 = arith.remsi %4, %7 : vector<8x32xi32>
    %c0_i32_3 = arith.constant 0 : i32
    %9 = vector.broadcast %c0_i32_3 : i32 to vector<8x32xi32>
    %10 = arith.cmpi ne, %8, %9 : vector<8x32xi32>
    %c0_i32_4 = arith.constant 0 : i32
    %11 = vector.broadcast %c0_i32_4 : i32 to vector<8x32xi32>
    %12 = arith.cmpi slt, %8, %11 : vector<8x32xi32>
    %c0_i32_5 = arith.constant 0 : i32
    %13 = arith.cmpi slt, %6, %c0_i32_5 : i32
    %14 = vector.broadcast %13 : i1 to vector<8x32xi1>
    %15 = vector.broadcast %14 : vector<8x32xi1> to vector<8x32xi1>
    %16 = arith.xori %12, %15 : vector<8x32xi1>
    %17 = arith.andi %16, %10 : vector<8x32xi1>
    %18 = vector.broadcast %6 : i32 to vector<8x32xi32>
    %19 = arith.addi %8, %18 : vector<8x32xi32>
    %20 = arith.select %17, %19, %8 : vector<8x32xi1>, vector<8x32xi32>
    %c0_i32_6 = arith.constant 0 : i32
    %21 = vector.broadcast %c0_i32_6 : i32 to vector<8x32xi32>
    %22 = arith.cmpi eq, %20, %21 : vector<8x32xi32>
    %cst = arith.constant 0.000000e+00 : f32
    %23 = vector.broadcast %cst : f32 to vector<8x32xf32>
    %24 = arith.select %22, %23, %3 : vector<8x32xi1>, vector<8x32xf32>
    %c0_7 = arith.constant 0 : index
    %c0_8 = arith.constant 0 : index
    %25 = vector.load %arg2[%c0_7, %c0_8] : memref<32x32xf32, #tpu.memory_space<vmem>>, vector<32x32xf32>
    %cst_9 = arith.constant dense<0.000000e+00> : vector<8x32xf32>
    %26 = tpu.matmul %24, %25, %cst_9 {dimension_numbers = #tpu.dot_dimension_numbers<[1], [0], [0], [1], [0, 0, 1, 1], [], []>} : vector<8x32xf32>, vector<32x32xf32>, vector<8x32xf32> -> vector<8x32xf32>
    %27 = arith.addf %1, %26 : vector<8x32xf32>
    %c0_10 = arith.constant 0 : index
    %c0_11 = arith.constant 0 : index
    %28 = vector.load %arg3[%c0_10, %c0_11] : memref<1x32xf32, #tpu.memory_space<vmem>>, vector<1x32xf32>
    %29 = vector.broadcast %28 : vector<1x32xf32> to vector<8x32xf32>
    %30 = arith.addf %27, %29 : vector<8x32xf32>
    %31 = vector.shape_cast %30 : vector<8x32xf32> to vector<1x8x32xf32>
    %c0_12 = arith.constant 0 : index
    %c0_13 = arith.constant 0 : index
    %c0_14 = arith.constant 0 : index
    %32 = vector.load %arg4[%c0_12, %c0_13, %c0_14] : memref<1x8x32xf32, #tpu.memory_space<vmem>>, vector<1x8x32xf32>
    tpu.vector_store %arg4[%c0_12, %c0_13, %c0_14], %31 {strides = array<i32>} : memref<1x8x32xf32, #tpu.memory_space<vmem>>, vector<1x8x32xf32>,
    return
  }
  func.func @transform_0(%arg0: i32) -> (i32, i32, i32) {
    %c0_i32 = arith.constant 0 : i32
    %c0_i32_0 = arith.constant 0 : i32
    %c0_i32_1 = arith.constant 0 : i32
    return %arg0, %c0_i32, %c0_i32_0 : i32, i32, i32
  }
  func.func @transform_1(%arg0: i32) -> (i32, i32) {
    %c0_i32 = arith.constant 0 : i32
    %c0_i32_0 = arith.constant 0 : i32
    %c0_i32_1 = arith.constant 0 : i32
    return %c0_i32, %c0_i32_0 : i32, i32
  }
  func.func @transform_2(%arg0: i32) -> (i32, i32) {
    %c0_i32 = arith.constant 0 : i32
    %c0_i32_0 = arith.constant 0 : i32
    %c0_i32_1 = arith.constant 0 : i32
    return %c0_i32, %c0_i32_0 : i32, i32
  }
  func.func @transform_3(%arg0: i32) -> (i32, i32, i32) {
    %c0_i32 = arith.constant 0 : i32
    %c0_i32_0 = arith.constant 0 : i32
    %c0_i32_1 = arith.constant 0 : i32
    return %arg0, %c0_i32, %c0_i32_0 : i32, i32, i32
  }
}

</mosaic_0001>

<llo_original>
// kernel: tpu_custom_call.1
$region0: #{tpu_custom_call.1}
  #allocation0 [shape = 'u32[]', space=smem, size = 0x4, offset = 0x4, fixed_abs, tag = 'smem constant byte address 0x4 - core index']
  #allocation1 [shape = 'u32[144,128]{1,0:T(1,128)}', space=vmem, size = 0x12000, scoped, tag = 'internal scratch']
  %s0 = inlined_call_operand.hbm [shape: f32[2,8,32], index: 0, kind: input, shape index: {}]
  %s1 = inlined_call_operand.hbm [shape: f32[32,32], index: 1, kind: input, shape index: {}]
  %s2 = inlined_call_operand.vmem [shape: f32[1,32], index: 2, kind: input, shape index: {}]
  %s3 = inlined_call_operand.hbm [shape: f32[2,8,32], index: 3, kind: output, shape index: {}]
  %s4 = sld [smem:[#allocation0]]
  $region53: #{tpu_custom_call.1} parent=0
    _
  %s6 = ssub.s32 1, %s4
  %s7 = scalar_select 0, %s6, %s4
  $region1: #{tpu_custom_call.1} parent=0
    #allocation2 [shape = 'u8[8192]{0}', space=vmem, size = 0x2000, scoped, tag = 'input window, operand 0']
    #allocation3 [shape = 's32[2]{0}', space=sflag, size = 0x8, scoped, tag = 'scoped memory for tpu_custom_call.1']
    #allocation4 [shape = 's32[2]{0}', space=sflag, size = 0x8, scoped, tag = 'scoped memory for tpu_custom_call.1']
    #allocation5 [shape = 'u8[16384]{0}', space=vmem, size = 0x4000, scoped, tag = 'input window, operand 1, single buffered']
    #allocation6 [shape = 's32[1]{0}', space=sflag, size = 0x4, scoped, tag = 'scoped memory for tpu_custom_call.1']
    #allocation7 [shape = 'u8[8192]{0}', space=vmem, size = 0x2000, scoped, tag = 'output window, operand 0']
    %8 = vsyncpa [#allocation3], 0
    %s9 = scalar_lea.sflag [#allocation3], 1
    %10 = vsyncpa %s9, 0
    %11 = vsyncpa [#allocation6], 0
    %12 = vsyncpa [#allocation4], 0
    %s13 = scalar_lea.sflag [#allocation4], 1
    %14 = vsyncpa %s13, 0
    loop: start=0, step=1, limit=4
    $region2: #{tpu_custom_call.1} parent=1 // loop_pre_header
      _
    $region3: #{tpu_custom_call.1} parent=1 // loop_header
      %s16 = sphi 0, %s20
      %p17 = scmp.ge.s32.totalorder %s16, 4
      %s26 = sphi 0, %s28
      %s29 = sphi 0, %s26
      %s30 = sphi 0, %s29
      %s46 = sphi 0, %s30
      %s50 = sphi 0, %s50
      %s52 = sphi 0, %s50
      %s53 = sphi 0, %s52
      %s67 = sphi 0, %s53
      %s71 = sphi 0, %s71
      %s73 = sphi 0, %s71
      %s74 = sphi 0, %s73
      %s88 = sphi 0, %s74
      %s94 = sphi 0, %s96
      %s97 = sphi 0, %s94
      %s98 = sphi 0, %s97
      %s114 = sphi 0, %s98
    $region4: #{tpu_custom_call.1} parent=1 // loop_header_branch
      %19 = sbr.rel (%p17) target = $region8
    $region5: #{tpu_custom_call.1} parent=1 // loop_body
      %s21 = ssub.s32 %s16, 1
      %s22 = ssub.s32 %s16, 2
      %s23 = sadd.s32 %s16, 1
      %s24 = ssub.s32 %s16, %s23
      %p25 = scmp.eq.s32.totalorder %s24, 0
      %s27 = sadd.s32 %s26, 1
      %s28 = scalar_select %p25, %s26, %s27
      %p31 = pneg %p25
      %p32 = scmp.eq.s32.totalorder %s16, 1
      %p33 = por %p31, %p32
      %p34 = scmp.ne.s32.totalorder %s26, %s29
      %p35 = scmp.eq.s32.totalorder %s16, 0
      %p36 = por %p34, %p35
      %p37 = scmp.ne.s32.totalorder %s26, %s29
      %p38 = scmp.eq.s32.totalorder %s21, 1
      %p39 = por %p37, %p38
      %p40 = scmp.ne.s32.totalorder %s29, %s30
      %p41 = scmp.eq.s32.totalorder %s21, 0
      %p42 = por %p40, %p41
      %p43 = scmp.ne.s32.totalorder %s29, %s30
      %p44 = scmp.eq.s32.totalorder %s22, 1
      %p45 = por %p43, %p44
      %p47 = scmp.ne.s32.totalorder %s30, %s46
      %p48 = scmp.eq.s32.totalorder %s22, 0
      %p49 = por %p47, %p48
      %s51 = sadd.s32 %s50, 1
      %p54 = scmp.eq.s32.totalorder %s16, 1
      %p55 = scmp.ne.s32.totalorder %s50, %s52
      %p56 = scmp.eq.s32.totalorder %s16, 0
      %p57 = por %p55, %p56
      %p58 = scmp.ne.s32.totalorder %s50, %s52
      %p59 = scmp.eq.s32.totalorder %s21, 1
      %p60 = por %p58, %p59
      %p61 = scmp.ne.s32.totalorder %s52, %s53
      %p62 = scmp.eq.s32.totalorder %s21, 0
      %p63 = por %p61, %p62
      %p64 = scmp.ne.s32.totalorder %s52, %s53
      %p65 = scmp.eq.s32.totalorder %s22, 1
      %p66 = por %p64, %p65
      %p68 = scmp.ne.s32.totalorder %s53, %s67
      %p69 = scmp.eq.s32.totalorder %s22, 0
      %p70 = por %p68, %p69
      %s72 = sadd.s32 %s71, 1
      %p75 = scmp.eq.s32.totalorder %s16, 1
      %p76 = scmp.ne.s32.totalorder %s71, %s73
      %p77 = scmp.eq.s32.totalorder %s16, 0
      %p78 = por %p76, %p77
      %p79 = scmp.ne.s32.totalorder %s71, %s73
      %p80 = scmp.eq.s32.totalorder %s21, 1
      %p81 = por %p79, %p80
      %p82 = scmp.ne.s32.totalorder %s73, %s74
      %p83 = scmp.eq.s32.totalorder %s21, 0
      %p84 = por %p82, %p83
      %p85 = scmp.ne.s32.totalorder %s73, %s74
      %p86 = scmp.eq.s32.totalorder %s22, 1
      %p87 = por %p85, %p86
      %p89 = scmp.ne.s32.totalorder %s74, %s88
      %p90 = scmp.eq.s32.totalorder %s22, 0
      %p91 = por %p89, %p90
      %s92 = ssub.s32 %s16, %s23
      %p93 = scmp.eq.s32.totalorder %s92, 0
      %s95 = sadd.s32 %s94, 1
      %s96 = scalar_select %p93, %s94, %s95
      %p99 = pneg %p93
      %p100 = scmp.eq.s32.totalorder %s16, 1
      %p101 = por %p99, %p100
      %p102 = scmp.ne.s32.totalorder %s94, %s97
      %p103 = scmp.eq.s32.totalorder %s16, 0
      %p104 = por %p102, %p103
      %p105 = scmp.ne.s32.totalorder %s94, %s97
      %p106 = scmp.eq.s32.totalorder %s21, 1
      %p107 = por %p105, %p106
      %p108 = scmp.ne.s32.totalorder %s97, %s98
      %p109 = scmp.eq.s32.totalorder %s21, 0
      %p110 = por %p108, %p109
      %p111 = scmp.ne.s32.totalorder %s97, %s98
      %p112 = scmp.eq.s32.totalorder %s22, 1
      %p113 = por %p111, %p112
      %p115 = scmp.ne.s32.totalorder %s98, %s114
      %p116 = scmp.eq.s32.totalorder %s22, 0
      %p117 = por %p115, %p116
      %p118 = scmp.le.s32.totalorder 1, %s16
      %p119 = scmp.lt.s32.totalorder %s16, 3
      %p120 = pnand %p118, %p119
      %p121 = pneg %p120
      // Predicated region
      $region9: #{tpu_custom_call.1} parent=5 // pred_check
        _
      $region10: #{tpu_custom_call.1} parent=5 // pred_check_branch
        %123 = sbr.rel (%p120) target = $region12
      $region11: #{tpu_custom_call.1} parent=5 // pred_region
        %s124 = ssub.s32 %s16, 1
        // Predicated region
        $region13: #{tpu_custom_call.1} parent=11 // pred_check
          %p125 = pneg %p63
        $region14: #{tpu_custom_call.1} parent=11 // pred_check_branch
          %127 = sbr.rel (%p125) target = $region16
        $region15: #{tpu_custom_call.1} parent=11 // pred_region
          %s129 = ssub.s32 512, 512
          %130 = vsyncadd [#allocation6], %s129
          %s131 = sshll.u32 [#allocation5], 4
          %s132 = int_to_ptr.vmem [resolvable:$true] %s131
          %137 = dma.hbm_to_vmem [thread:$0]  %s1, 512, %s132, [#allocation6], 128, 128, 8
        $region16: #{tpu_custom_call.1} parent=11 // pred_fallthru
          _
        // Predicated region
        $region17: #{tpu_custom_call.1} parent=11 // pred_check
          %p138 = pneg %p84
        $region18: #{tpu_custom_call.1} parent=11 // pred_check_branch
          %140 = sbr.rel (%p138) target = $region20
        $region19: #{tpu_custom_call.1} parent=11 // pred_region
          _
        $region20: #{tpu_custom_call.1} parent=11 // pred_fallthru
          _
      $region12: #{tpu_custom_call.1} parent=5 // pred_fallthru
        _
      %p141 = scmp.lt.s32.totalorder %s16, 2
      // Predicated region
      $region21: #{tpu_custom_call.1} parent=5 // pred_check
        %p142 = pneg %p141
      $region22: #{tpu_custom_call.1} parent=5 // pred_check_branch
        %144 = sbr.rel (%p142) target = $region24
      $region23: #{tpu_custom_call.1} parent=5 // pred_region
        // Predicated region
        $region25: #{tpu_custom_call.1} parent=23 // pred_check
          %p145 = pneg %p36
        $region26: #{tpu_custom_call.1} parent=23 // pred_check_branch
          %147 = sbr.rel (%p145) target = $region28
        $region27: #{tpu_custom_call.1} parent=23 // pred_region
          %s148 = sand.u32 %s26, 1
          %s149 = scalar_lea.sflag [#allocation3], %s148
          %s150 = sand.u32 %s26, 1
          %s151 = smul.addr %s150, 8
          %s152 = scalar_lea.vmem [#allocation2], %s151
          %s154 = ssub.s32 128, 128
          %155 = vsyncadd %s149, %s154
          %s156 = smul.addr %s16, 128
          %s157 = scalar_lea.hbm %s0, %s156
          %s159 = sshll.u32 %s152, 4
          %s160 = int_to_ptr.vmem [resolvable:$true] %s159
          %162 = dma.hbm_to_vmem [thread:$0]  %s157, 128, %s160, %s149
        $region28: #{tpu_custom_call.1} parent=23 // pred_fallthru
          _
      $region24: #{tpu_custom_call.1} parent=5 // pred_fallthru
        _
      %p163 = scmp.le.s32.totalorder 1, %s16
      %p164 = scmp.lt.s32.totalorder %s16, 3
      %p165 = pnand %p163, %p164
      %p166 = pneg %p165
      // Predicated region
      $region29: #{tpu_custom_call.1} parent=5 // pred_check
        _
      $region30: #{tpu_custom_call.1} parent=5 // pred_check_branch
        %168 = sbr.rel (%p165) target = $region32
      $region31: #{tpu_custom_call.1} parent=5 // pred_region
        %s169 = ssub.s32 %s16, 1
        %s170 = sand.u32 %s29, 1
        %s171 = scalar_lea.sflag [#allocation3], %s170
        %s172 = sand.u32 %s29, 1
        %s173 = smul.addr %s172, 8
        %s174 = scalar_lea.vmem [#allocation2], %s173
        // Predicated region
        $region33: #{tpu_custom_call.1} parent=31 // pred_check
          %p175 = pneg %p42
        $region34: #{tpu_custom_call.1} parent=31 // pred_check_branch
          %177 = sbr.rel (%p175) target = $region36
        $region35: #{tpu_custom_call.1} parent=31 // pred_region
          %178 = dma.done %s171, 128
        $region36: #{tpu_custom_call.1} parent=31 // pred_fallthru
          _
        // Predicated region
        $region37: #{tpu_custom_call.1} parent=31 // pred_check
          %p179 = pneg %p63
        $region38: #{tpu_custom_call.1} parent=31 // pred_check_branch
          %181 = sbr.rel (%p179) target = $region40
        $region39: #{tpu_custom_call.1} parent=31 // pred_region
          %182 = dma.done [#allocation6], 512
        $region40: #{tpu_custom_call.1} parent=31 // pred_fallthru
          _
        %s183 = sand.u32 %s29, 1
        %s184 = scalar_lea.sflag [#allocation3], %s183
        %s185 = sand.u32 %s29, 1
        %s186 = smul.addr %s185, 8
        %s187 = scalar_lea.vmem [#allocation2], %s186
        %p188 = pneg %p42
        %p189 = pneg %p39
        %p190 = pneg %p63
        %p191 = pneg %p60
        %p192 = pneg %p84
        %p193 = pneg %p81
        %p194 = pneg %p110
        %p195 = pneg %p107
        %s196 = sand.u32 %s97, 1
        %s197 = scalar_lea.sflag [#allocation4], %s196
        %s198 = sand.u32 %s97, 1
        %s199 = smul.addr %s198, 8
        %s200 = scalar_lea.vmem [#allocation7], %s199
        %v201 = vld [vmem:[%s174] sm:$0xff]
        %v202 = vrot.slane %v201, 7
        %v203 = vsub.f32 %v201, %v202
        %v204 = vlaneseq
        %v205 = vshrl.u32 %v204, 7
        %vm206 = vcmp.lt.s32.totalorder %v205, 0
        %v207 = vsub.s32 0, %v205
        %v208 = vsel %vm206, %v207, %v205
        %v209 = vshrl.u32 %v208, 3
        %v210 = vand.u32 %v208, 7
        %v211 = vsub.s32 0, %v210
        %v212 = vsel %vm206, %v211, %v210
        %vm213 = vcmp.ne.s32.totalorder %v212, 0
        %vm214 = vcmp.lt.s32.totalorder %v212, 0
        %vm215 = vmand %vm214, %vm213
        %v216 = vadd.s32 %v212, 8
        %v217 = vsel %vm215, %v216, %v212
        %vm218 = vcmp.eq.s32.totalorder %v217, 0
        %v219 = vsel %vm218, 0.0, %v203
        %v220 = vld [vmem:[#allocation5] sm:$0xff]
        %v221 = vld [vmem:[#allocation5 + $0x8] sm:$0xff]
        %v222 = vld [vmem:[#allocation5 + $0x10] sm:$0xff]
        %v223 = vld [vmem:[#allocation5 + $0x18] sm:$0xff]
        %vm224 = vcmask 261120
        %v226 = vsel %vm224, %v219, 0
        %228 = vmatprep.subr.mxu0 0.0
        %229 = vmatpush1.msra.mxu0 %v220
        %230 = vmatprep.subr.mxu0 0.0
        %231 = vmatpush1.msra.mxu0 %v221
        %232 = vmatprep.subr.mxu0 0.0
        %233 = vmatpush1.msra.mxu0 %v222
        %234 = vmatprep.subr.mxu0 0.0
        %235 = vmatpush1.msra.mxu0 %v223
        %236 = vmatprep.subr.mxu0 0.0
        %237 = vmatpush1.msra.mxu0 0.0
        %238 = vmatprep.subr.mxu0 0.0
        %239 = vmatpush1.msra.mxu0 0.0
        %240 = vmatprep.subr.mxu0 0.0
        %241 = vmatpush1.msra.mxu0 0.0
        %242 = vmatprep.subr.mxu0 0.0
        %243 = vmatpush1.msra.mxu0 0.0
        %244 = vmatprep.subr.mxu0 0.0
        %245 = vmatpush1.msra.mxu0 0.0
        %246 = vmatprep.subr.mxu0 0.0
        %247 = vmatpush1.msra.mxu0 0.0
        %248 = vmatprep.subr.mxu0 0.0
        %249 = vmatpush1.msra.mxu0 0.0
        %250 = vmatprep.subr.mxu0 0.0
        %251 = vmatpush1.msra.mxu0 0.0
        %252 = vmatprep.subr.mxu0 0.0
        %253 = vmatpush1.msra.mxu0 0.0
        %254 = vmatprep.subr.mxu0 0.0
        %255 = vmatpush1.msra.mxu0 0.0
        %256 = vmatprep.subr.mxu0 0.0
        %257 = vmatpush1.msra.mxu0 0.0
        %258 = vmatprep.subr.mxu0 0.0
        %259 = vmatpush1.msra.mxu0 0.0
        %260 = vmatprep.subr.mxu0 0.0
        %261 = vmatpush1.msra.mxu0 0.0
        %262 = vmatprep.subr.mxu0 0.0
        %263 = vmatpush1.msra.mxu0 0.0
        %264 = vmatprep.subr.mxu0 0.0
        %265 = vmatpush1.msra.mxu0 0.0
        %266 = vmatprep.subr.mxu0 0.0
        %267 = vmatpush1.msra.mxu0 0.0
        %268 = vmatprep.subr.mxu0 0.0
        %269 = vmatpush1.msra.mxu0 0.0
        %270 = vmatprep.subr.mxu0 0.0
        %271 = vmatpush1.msra.mxu0 0.0
        %272 = vmatprep.subr.mxu0 0.0
        %273 = vmatpush1.msra.mxu0 0.0
        %274 = vmatprep.subr.mxu0 0.0
        %275 = vmatpush1.msra.mxu0 0.0
        %276 = vmatprep.subr.mxu0 0.0
        %277 = vmatpush1.msra.mxu0 0.0
        %278 = vmatprep.subr.mxu0 0.0
        %279 = vmatpush1.msra.mxu0 0.0
        %280 = vmatprep.subr.mxu0 0.0
        %281 = vmatpush1.msra.mxu0 0.0
        %282 = vmatprep.subr.mxu0 0.0
        %283 = vmatpush1.msra.mxu0 0.0
        %284 = vmatprep.subr.mxu0 0.0
        %285 = vmatpush1.msra.mxu0 0.0
        %286 = vmatprep.subr.mxu0 0.0
        %287 = vmatpush1.msra.mxu0 0.0
        %288 = vmatprep.subr.mxu0 0.0
        %289 = vmatpush1.msra.mxu0 0.0
        %290 = vmatprep.subr.mxu0 0.0
        %291 = vmatpush1.msra.mxu0 0.0
        %292 = vmatprep.mubr.f32.mxu0 0.0
        %293 = vmatmul.mubr.f32.gmra.mrb[0].mxu0 %v226
        %v294 = vpop.f32.mrb[0].mxu0
        %v295 = vadd.f32 0.0, %v294
        %v296 = vpop.f32.mrb[0].mxu0
        %297 = vdwg.mxu0
        %v298 = vadd.f32 %v201, %v295
        %v299 = vld [vmem:[%s2] sm:$0x1]
        %v301 = vlaneseq
        %v302 = vshrl.u32 %v301, 7
        %v303 = vsub.s32 0, %v302
        %v304 = vrot.slane %v299, %v303
        %v306 = vadd.f32 %v298, %v304
        %307 = vst.msk [vmem:[%s200] sm:$0xff] %vm224, %v306
        %s308 = sand.u32 %s97, 1
        %s309 = scalar_lea.sflag [#allocation4], %s308
        %s310 = sand.u32 %s97, 1
        %s311 = smul.addr %s310, 8
        %s312 = scalar_lea.vmem [#allocation7], %s311
        // Predicated region
        $region41: #{tpu_custom_call.1} parent=31 // pred_check
          %p313 = pneg %p107
        $region42: #{tpu_custom_call.1} parent=31 // pred_check_branch
          %315 = sbr.rel (%p313) target = $region44
        $region43: #{tpu_custom_call.1} parent=31 // pred_region
          %s317 = ssub.s32 128, 128
          %318 = vsyncadd %s309, %s317
          %s319 = smul.addr %s21, 128
          %s320 = scalar_lea.hbm %s3, %s319
          %s322 = sshll.u32 %s312, 4
          %s323 = int_to_ptr.vmem [resolvable:$true] %s322
          %325 = dma.vmem_to_hbm [thread:$0]  %s323, 128, %s320, %s309
        $region44: #{tpu_custom_call.1} parent=31 // pred_fallthru
          _
      $region32: #{tpu_custom_call.1} parent=5 // pred_fallthru
        _
      %p326 = scmp.le.s32.totalorder 2, %s16
      // Predicated region
      $region45: #{tpu_custom_call.1} parent=5 // pred_check
        %p327 = pneg %p326
      $region46: #{tpu_custom_call.1} parent=5 // pred_check_branch
        %329 = sbr.rel (%p327) target = $region48
      $region47: #{tpu_custom_call.1} parent=5 // pred_region
        %s330 = ssub.s32 %s16, 2
        // Predicated region
        $region49: #{tpu_custom_call.1} parent=47 // pred_check
          %p331 = pneg %p113
        $region50: #{tpu_custom_call.1} parent=47 // pred_check_branch
          %333 = sbr.rel (%p331) target = $region52
        $region51: #{tpu_custom_call.1} parent=47 // pred_region
          %s334 = sand.u32 %s98, 1
          %s335 = scalar_lea.sflag [#allocation4], %s334
          %s336 = sand.u32 %s98, 1
          %s337 = smul.addr %s336, 8
          %s338 = scalar_lea.vmem [#allocation7], %s337
          %339 = dma.done %s335, 128
        $region52: #{tpu_custom_call.1} parent=47 // pred_fallthru
          _
      $region48: #{tpu_custom_call.1} parent=5 // pred_fallthru
        _
    $region6: #{tpu_custom_call.1} parent=1 // loop_footer
      %s20 = sadd.s32 1, %s16
    $region7: #{tpu_custom_call.1} parent=1 // loop_footer_branch
      %15 = sbr.rel target = $region3
    $region8: #{tpu_custom_call.1} parent=1 // loop_exit
      _
    %340 = vsyncpa [#allocation3], 1
    %s341 = scalar_lea.sflag [#allocation3], 1
    %342 = vsyncpa %s341, 1
    %343 = vsyncpa [#allocation6], 1
    %344 = vsyncpa [#allocation4], 1
    %s345 = scalar_lea.sflag [#allocation4], 1
    %346 = vsyncpa %s345, 1

</llo_original>
